<compile_context>
chip_gen: v5e
topology: v5e:2x2
jax: 0.10.0
libtpu: 0.0.40
codegen_flags: <defaults>
</compile_context>

<pallas_src>
import functools

import jax
import jax.numpy as jnp
from jax.experimental import pallas as pl
from jax.experimental.pallas import tpu as pltpu


# --------------------------------------------------------------------------- #
# Kernels
# --------------------------------------------------------------------------- #
def _kalman_fusion_scalar_k_kernel(pred_ref, warp_ref, out_ref, *, K):
    """Kalman blend with a compile-time scalar gain (P == 0 case)."""
    pred = pred_ref[...]
    warp = warp_ref[...]
    fused = warp + K * (pred - warp)
    # Both PyTorch mask-assignments write `pred`, so their union is exact
    # regardless of assignment order.
    take_pred = jnp.logical_or(warp <= 0.0, jnp.abs(warp - pred) > 1.0)
    out_ref[...] = jnp.where(take_pred, pred, fused)


def _kalman_fusion_kernel(pred_ref, warp_ref, p_ref, out_ref, *, R, Q):
    """General Kalman blend with an elementwise covariance P."""
    pred = pred_ref[...]
    warp = warp_ref[...]
    pminus = p_ref[...] + Q
    k = pminus / (pminus + R)
    fused = warp + k * (pred - warp)
    take_pred = jnp.logical_or(warp <= 0.0, jnp.abs(warp - pred) > 1.0)
    out_ref[...] = jnp.where(take_pred, pred, fused)


# --------------------------------------------------------------------------- #
# Wrapper (mirrors KalmanFusion.memory_query's `if 'memory' in state` branch)
# --------------------------------------------------------------------------- #
def _lane_dense_layout(total_elems, fallback_lanes):
    """Pick a (rows, lanes) 2D view with lanes a multiple of 128 if possible."""
    for lanes in (4096, 2048, 1024, 512, 256, 128):
        if total_elems % lanes == 0:
            return total_elems // lanes, lanes
    # Fall back: keep the original trailing dim as lanes (a full-extent last
    # block dim is always a legal BlockSpec, even if not 128-aligned).
    return total_elems // fallback_lanes, fallback_lanes


def kalman_fusion_memory_query(pred_disp, pred_disp_warp, P=None,
                               R=1e-5, Q=1e-5):
    """Replicates KalmanFusion.memory_query's disparity fusion.

    pred_disp, pred_disp_warp : [B, H, W] float32 disparity maps.
    P                         : optional [B, H, W] covariance; None means the
                                module's `self.P = zeros_like(pred_disp)` init.
    Returns a dict mirroring the PyTorch `outputs` updates.
    """
    orig_shape = pred_disp.shape
    n = int(pred_disp.size)
    rows, lanes = _lane_dense_layout(n, int(orig_shape[-1]))

    # Row tiling: cap each block at ~512K elems (2 MiB f32 per array) so that
    # 4 arrays x 2 pipeline buffers stays well under every generation's VMEM
    # budget (v7x: 64 MiB physical) while keeping tiles big enough to sit near
    # the HBM roofline.
    max_block_elems = 512 * 1024
    if rows * lanes <= max_block_elems or rows <= 8:
        block_rows = rows
    else:
        block_rows = max(8, min(rows, max_block_elems // lanes))
        block_rows -= block_rows % 8          # keep (8, 128)-tileable
    grid = (pl.cdiv(rows, block_rows),)

    spec = pl.BlockSpec((block_rows, lanes), lambda i: (i, 0))

    pred2 = pred_disp.reshape(rows, lanes)
    warp2 = pred_disp_warp.reshape(rows, lanes)

    if P is None:
        # self.P is initialized to zeros and never updated, so the gain is the
        # compile-time scalar K = Q / (Q + R); skip the P read entirely.
        gain = float(Q) / (float(Q) + float(R))
        kernel = functools.partial(_kalman_fusion_scalar_k_kernel, K=gain)
        args = (pred2, warp2)
        in_specs = [spec, spec]
    else:
        kernel = functools.partial(_kalman_fusion_kernel,
                                   R=float(R), Q=float(Q))
        args = (pred2, warp2, P.reshape(rows, lanes))
        in_specs = [spec, spec, spec]

    fused = pl.pallas_call(
        kernel,
        out_shape=jax.ShapeDtypeStruct((rows, lanes), pred_disp.dtype),
        grid_spec=pltpu.PrefetchScalarGridSpec(
            num_scalar_prefetch=0,
            grid=grid,
            in_specs=in_specs,
            out_specs=spec,
        ),
        compiler_params=pltpu.CompilerParams(
            dimension_semantics=("parallel",),
            vmem_limit_bytes=32 * 1024 * 1024,
        ),
    )(*args).reshape(orig_shape)

    outputs = {
        "pred_disp": fused,
        # TODO(synk): requires_grad bookkeeping on fusion_weights has no JAX
        # equivalent; if downstream only needs "zero", these full-frame zeros
        # writes could be replaced by minimal-shape broadcasts to save HBM.
        "fusion_weights": jnp.zeros_like(pred_disp),
        "reset_weights": jnp.zeros_like(pred_disp),
        "pred_curr": pred_disp,
        "pred_warp": pred_disp_warp,
    }
    return outputs


# --------------------------------------------------------------------------- #
# Pure-JAX reference (mirrors the PyTorch mask-assignment order exactly)
# --------------------------------------------------------------------------- #
def _reference(pred, warp, P, R, Q):
    pminus = P + Q
    k = pminus / (pminus + R)
    fused = warp + k * (pred - warp)
    fused = jnp.where(warp <= 0.0, pred, fused)                   # warp invalid
    fused = jnp.where(jnp.abs(warp - pred) > 1.0, pred, fused)    # outliers
    return fused


if __name__ == "__main__":
    key = jax.random.PRNGKey(0)
    k1, k2, k3 = jax.random.split(key, 3)

    B, H, W = 2, 16, 16
    R, Q = 1e-5, 1e-5

    pred_disp = jax.random.uniform(k1, (B, H, W), jnp.float32, 0.0, 64.0)
    # Non-positive entries in warp exercise the warp<=0 override; large spread
    # exercises the |warp - pred| > 1 outlier override.
    pred_disp_warp = jax.random.uniform(k2, (B, H, W), jnp.float32, -4.0, 64.0)

    # Path 1: module's first query (self.P is None -> zeros) -> scalar-K kernel.
    out = kalman_fusion_memory_query(pred_disp, pred_disp_warp, P=None, R=R, Q=Q)
    fused = jax.block_until_ready(out["pred_disp"])
    ref = _reference(pred_disp, pred_disp_warp, jnp.zeros_like(pred_disp), R, Q)
    assert jnp.allclose(fused, ref, atol=1e-6), "scalar-K path mismatch"

    # Path 2: explicit elementwise covariance P -> general kernel.
    P_arr = jax.random.uniform(k3, (B, H, W), jnp.float32, 0.0, 1e-4)
    out_p = kalman_fusion_memory_query(pred_disp, pred_disp_warp, P=P_arr, R=R, Q=Q)
    fused_p = jax.block_until_ready(out_p["pred_disp"])
    ref_p = _reference(pred_disp, pred_disp_warp, P_arr, R, Q)
    assert jnp.allclose(fused_p, ref_p, atol=1e-6), "elementwise-P path mismatch"

    print("KERNEL_OK")
</pallas_src>

<mosaic_0001>
module attributes {stable_mosaic.version = 11 : i64} {
  func.func @_kalman_fusion_scalar_k_kernel(%arg0: i32, %arg1: memref<1x512xf32, #tpu.memory_space<vmem>>, %arg2: memref<1x512xf32, #tpu.memory_space<vmem>>, %arg3: memref<1x512xf32, #tpu.memory_space<vmem>>) attributes {dimension_semantics = [#tpu.dimension_semantics<parallel>], iteration_bounds = array<i64: 1>, scalar_prefetch = 0 : i64, scratch_operands = 0 : i64, tpu.core_type = #tpu.core_type<tc>, window_params = [{transform_indices = @transform_0, window_bounds = array<i64: 1, 512>}, {transform_indices = @transform_1, window_bounds = array<i64: 1, 512>}, {transform_indices = @transform_2, window_bounds = array<i64: 1, 512>}]} {
    %c0 = arith.constant 0 : index
    %c0_0 = arith.constant 0 : index
    %0 = vector.load %arg1[%c0, %c0_0] : memref<1x512xf32, #tpu.memory_space<vmem>>, vector<1x512xf32>
    %c0_1 = arith.constant 0 : index
    %c0_2 = arith.constant 0 : index
    %1 = vector.load %arg2[%c0_1, %c0_2] : memref<1x512xf32, #tpu.memory_space<vmem>>, vector<1x512xf32>
    %2 = arith.subf %0, %1 : vector<1x512xf32>
    %cst = arith.constant 5.000000e-01 : f32
    %3 = vector.broadcast %cst : f32 to vector<1x512xf32>
    %4 = arith.mulf %3, %2 : vector<1x512xf32>
    %5 = arith.addf %1, %4 : vector<1x512xf32>
    %cst_3 = arith.constant 0.000000e+00 : f32
    %6 = vector.broadcast %cst_3 : f32 to vector<1x512xf32>
    %7 = arith.cmpf ole, %1, %6 : vector<1x512xf32>
    %8 = arith.subf %1, %0 : vector<1x512xf32>
    %9 = math.absf %8 : vector<1x512xf32>
    %cst_4 = arith.constant 1.000000e+00 : f32
    %10 = vector.broadcast %cst_4 : f32 to vector<1x512xf32>
    %11 = arith.cmpf ogt, %9, %10 : vector<1x512xf32>
    %12 = arith.ori %7, %11 : vector<1x512xi1>
    %13 = arith.select %12, %0, %5 : vector<1x512xi1>, vector<1x512xf32>
    %c0_5 = arith.constant 0 : index
    %c0_6 = arith.constant 0 : index
    %14 = vector.load %arg3[%c0_5, %c0_6] : memref<1x512xf32, #tpu.memory_space<vmem>>, vector<1x512xf32>
    tpu.vector_store %arg3[%c0_5, %c0_6], %13 {strides = array<i32>} : memref<1x512xf32, #tpu.memory_space<vmem>>, vector<1x512xf32>,
    return
  }
  func.func @transform_0(%arg0: i32) -> (i32, i32) {
    %c0_i32 = arith.constant 0 : i32
    %c0_i32_0 = arith.constant 0 : i32
    return %arg0, %c0_i32 : i32, i32
  }
  func.func @transform_1(%arg0: i32) -> (i32, i32) {
    %c0_i32 = arith.constant 0 : i32
    %c0_i32_0 = arith.constant 0 : i32
    return %arg0, %c0_i32 : i32, i32
  }
  func.func @transform_2(%arg0: i32) -> (i32, i32) {
    %c0_i32 = arith.constant 0 : i32
    %c0_i32_0 = arith.constant 0 : i32
    return %arg0, %c0_i32 : i32, i32
  }
}

</mosaic_0001>

<llo_original>
// kernel: tpu_custom_call.1
$region0: #{tpu_custom_call.1}
  #allocation0 [shape = 'u32[]', space=smem, size = 0x4, offset = 0x4, fixed_abs, tag = 'smem constant byte address 0x4 - core index']
  #allocation1 [shape = 'u32[72,128]{1,0:T(1,128)}', space=vmem, size = 0x9000, scoped, tag = 'internal scratch']
  %s0 = inlined_call_operand.hbm [shape: f32[1,512], index: 0, kind: input, shape index: {}]
  %s1 = inlined_call_operand.hbm [shape: f32[1,512], index: 1, kind: input, shape index: {}]
  %s2 = inlined_call_operand.hbm [shape: f32[1,512], index: 2, kind: output, shape index: {}]
  %s3 = sld [smem:[#allocation0]]
  $region26: #{tpu_custom_call.1} parent=0
    _
  %s5 = ssub.s32 1, %s3
  %s6 = scalar_select 0, %s5, %s3
  $region1: #{tpu_custom_call.1} parent=0
    #allocation2 [shape = 'u8[2048]{0}', space=vmem, size = 0x800, scoped, tag = 'input window, operand 0, single buffered']
    #allocation3 [shape = 's32[1]{0}', space=sflag, size = 0x4, scoped, tag = 'scoped memory for tpu_custom_call.1']
    #allocation4 [shape = 's32[1]{0}', space=sflag, size = 0x4, scoped, tag = 'scoped memory for tpu_custom_call.1']
    #allocation5 [shape = 'u8[2048]{0}', space=vmem, size = 0x800, scoped, tag = 'input window, operand 1, single buffered']
    #allocation6 [shape = 's32[1]{0}', space=sflag, size = 0x4, scoped, tag = 'scoped memory for tpu_custom_call.1']
    #allocation7 [shape = 'u8[2048]{0}', space=vmem, size = 0x800, scoped, tag = 'output window, operand 0, single buffered']
    %7 = vsyncpa [#allocation3], 0
    %8 = vsyncpa [#allocation6], 0
    %9 = vsyncpa [#allocation4], 0
    // Predicated region
    $region2: #{tpu_custom_call.1} parent=1 // pred_check
      _
    $region3: #{tpu_custom_call.1} parent=1 // pred_check_branch
      %11 = sbr.rel (0) target = $region5
    $region4: #{tpu_custom_call.1} parent=1 // pred_region
      %13 = vsyncadd [#allocation3], 0
      %s15 = sshll.u32 %s0, 4
      %s16 = int_to_ptr.hbm [resolvable:$true] %s15
      %s17 = sshll.u32 [#allocation2], 4
      %s18 = int_to_ptr.vmem [resolvable:$true] %s17
      %20 = dma.hbm_to_vmem [thread:$0]  %s16, 64, %s18, [#allocation3]
    $region5: #{tpu_custom_call.1} parent=1 // pred_fallthru
      _
    // Predicated region
    $region6: #{tpu_custom_call.1} parent=1 // pred_check
      _
    $region7: #{tpu_custom_call.1} parent=1 // pred_check_branch
      %22 = sbr.rel (0) target = $region9
    $region8: #{tpu_custom_call.1} parent=1 // pred_region
      %24 = vsyncadd [#allocation6], 0
      %s26 = sshll.u32 %s1, 4
      %s27 = int_to_ptr.hbm [resolvable:$true] %s26
      %s28 = sshll.u32 [#allocation5], 4
      %s29 = int_to_ptr.vmem [resolvable:$true] %s28
      %31 = dma.hbm_to_vmem [thread:$0]  %s27, 64, %s29, [#allocation6]
    $region9: #{tpu_custom_call.1} parent=1 // pred_fallthru
      _
    // Predicated region
    $region10: #{tpu_custom_call.1} parent=1 // pred_check
      _
    $region11: #{tpu_custom_call.1} parent=1 // pred_check_branch
      %33 = sbr.rel (0) target = $region13
    $region12: #{tpu_custom_call.1} parent=1 // pred_region
      %35 = dma.done [#allocation3], 64
    $region13: #{tpu_custom_call.1} parent=1 // pred_fallthru
      _
    // Predicated region
    $region14: #{tpu_custom_call.1} parent=1 // pred_check
      _
    $region15: #{tpu_custom_call.1} parent=1 // pred_check_branch
      %37 = sbr.rel (0) target = $region17
    $region16: #{tpu_custom_call.1} parent=1 // pred_region
      %39 = dma.done [#allocation6], 64
    $region17: #{tpu_custom_call.1} parent=1 // pred_fallthru
      _
    %v40 = vld [vmem:[#allocation2] sm:$0xf]
    %v41 = vld [vmem:[#allocation5] sm:$0xf]
    %v42 = vsub.f32 %v40, %v41
    %v43 = vmul.f32 %v42, 0.5
    %v44 = vadd.f32 %v41, %v43
    %vm45 = vcmp.le.f32.partialorder %v41, 0.0
    %v46 = vsub.f32 %v41, %v40
    %v47 = vand.u32 2147483647, %v46
    %vm48 = vcmp.gt.f32.partialorder %v47, 1.0
    %vm49 = vmor %vm45, %vm48
    %v50 = vsel %vm49, %v40, %v44
    %v51 = vlaneseq
    %vm52 = vcmp.ge.s32.totalorder %v51, 0
    %vm53 = vcmp.lt.s32.totalorder %v51, 512
    %vm54 = vmand %vm52, %vm53
    %55 = vst.msk [vmem:[#allocation7] sm:$0xf] %vm54, %v50
    // Predicated region
    $region18: #{tpu_custom_call.1} parent=1 // pred_check
      _
    $region19: #{tpu_custom_call.1} parent=1 // pred_check_branch
      %57 = sbr.rel (0) target = $region21
    $region20: #{tpu_custom_call.1} parent=1 // pred_region
      %59 = vsyncadd [#allocation4], 0
      %s61 = sshll.u32 [#allocation7], 4
      %s62 = int_to_ptr.vmem [resolvable:$true] %s61
      %s63 = sshll.u32 %s2, 4
      %s64 = int_to_ptr.hbm [resolvable:$true] %s63
      %66 = dma.vmem_to_hbm [thread:$0]  %s62, 64, %s64, [#allocation4]
    $region21: #{tpu_custom_call.1} parent=1 // pred_fallthru
      _
    // Predicated region
    $region22: #{tpu_custom_call.1} parent=1 // pred_check
      _
    $region23: #{tpu_custom_call.1} parent=1 // pred_check_branch
      %68 = sbr.rel (0) target = $region25
    $region24: #{tpu_custom_call.1} parent=1 // pred_region
      %70 = dma.done [#allocation4], 64
    $region25: #{tpu_custom_call.1} parent=1 // pred_fallthru
      _
    %71 = vsyncpa [#allocation3], 1
    %72 = vsyncpa [#allocation6], 1
    %73 = vsyncpa [#allocation4], 1

</llo_original>
